<compile_context>
chip_gen: v6e
topology: v6e:2x2x1
jax: 0.10.0
libtpu: 0.0.40
codegen_flags: <defaults>
</compile_context>

<pallas_src>
import functools

import jax
import jax.numpy as jnp
from jax.experimental import pallas as pl
from jax.experimental.pallas import tpu as pltpu

DROP_P = 0.5          # nn.Dropout() default
ROW_ALIGN = 32        # satisfies bf16 (16-row) and int8 (32-row) sublane packing
MAX_TM = 512          # cap on token-tile rows for large B*L


def encoder_train_kernel(x_ref, w_ref, b_ref, keep_ref, am_ref, o_ref, *, scale):
    """(TM,H)bf16 @ (H,H)bf16 -> f32 acc, +bias, tanh, dropout+attention mask."""
    h = jnp.dot(x_ref[...], w_ref[...], preferred_element_type=jnp.float32)
    h = jnp.tanh(h + b_ref[...])                               # (TM, H) f32
    # keep (int8 {0,1}) * attention column (TM,1) * 1/(1-p) constant
    m = keep_ref[...].astype(jnp.float32) * (am_ref[...] * scale)
    o_ref[...] = (h * m).astype(o_ref.dtype)


def encoder_eval_kernel(x_ref, w_ref, b_ref, am_ref, o_ref):
    """Eval path: no dropout, only attention-mask zeroing of padded positions."""
    h = jnp.dot(x_ref[...], w_ref[...], preferred_element_type=jnp.float32)
    h = jnp.tanh(h + b_ref[...])
    o_ref[...] = (h * am_ref[...]).astype(o_ref.dtype)


def ner_encode(sentence, attention_mask, text_mask, emb_table, W, b,
               *, dropout_key=None, training=True, drop_p=DROP_P):
    """
    sentence:       (B, L) int32 token ids
    attention_mask: (B, L) {0,1}
    text_mask:      (B, L) {0,1}
    emb_table:      (V, H) f32
    W:              (H, H) f32
    b:              (1, H) f32
    returns: (num_selected, H) bf16 representations where text_mask == 1
    """
    B, L = sentence.shape
    H = emb_table.shape[1]
    T = B * L

    # Embedding lookup (gather) stays in JAX glue, in bf16 so the HBM round
    # trip of the gathered activations is halved.
    # TODO(synk): for production vocab/seq sizes fuse this gather into the
    # kernel (scalar-prefetched ids + manual DMA row gather) instead of
    # materializing x in HBM.
    ids = sentence.reshape(-1)
    x = emb_table.astype(jnp.bfloat16)[ids]                      # (T, H) bf16

    am = attention_mask.reshape(-1, 1).astype(jnp.float32)       # (T, 1)

    # Token tiling: one 32-aligned block for small T, 512-row tiles otherwise.
    if T >= MAX_TM:
        TM = MAX_TM
    else:
        TM = max(ROW_ALIGN, -(-T // ROW_ALIGN) * ROW_ALIGN)
    T_pad = -(-T // TM) * TM
    pad = T_pad - T
    if pad:
        x = jnp.pad(x, ((0, pad), (0, 0)))
        am = jnp.pad(am, ((0, pad), (0, 0)))                     # padded rows -> 0

    W_bf16 = W.astype(jnp.bfloat16)
    b_f32 = b.reshape(1, H).astype(jnp.float32)

    grid = (T_pad // TM,)
    out_shape = jax.ShapeDtypeStruct((T_pad, H), jnp.bfloat16)
    out_spec = pl.BlockSpec((TM, H), lambda i: (i, 0))
    compiler_params = pltpu.CompilerParams(
        dimension_semantics=("parallel",),           # independent token tiles
        vmem_limit_bytes=64 * 1024 * 1024,
    )

    if training:
        if dropout_key is None:
            dropout_key = jax.random.PRNGKey(0)
        keep = jax.random.bernoulli(dropout_key, 1.0 - drop_p, (T, H))
        keep = keep.astype(jnp.int8)                             # (T, H) int8
        if pad:
            keep = jnp.pad(keep, ((0, pad), (0, 0)))
        kernel = functools.partial(encoder_train_kernel,
                                   scale=1.0 / (1.0 - drop_p))
        rep = pl.pallas_call(
            kernel,
            out_shape=out_shape,
            grid=grid,
            in_specs=[
                pl.BlockSpec((TM, H), lambda i: (i, 0)),   # x tile (bf16)
                pl.BlockSpec((H, H), lambda i: (0, 0)),    # W, grid-invariant
                pl.BlockSpec((1, H), lambda i: (0, 0)),    # bias (f32)
                pl.BlockSpec((TM, H), lambda i: (i, 0)),   # keep mask (int8)
                pl.BlockSpec((TM, 1), lambda i: (i, 0)),   # attention column
            ],
            out_specs=out_spec,
            compiler_params=compiler_params,
        )(x, W_bf16, b_f32, keep, am)
    else:
        rep = pl.pallas_call(
            encoder_eval_kernel,
            out_shape=out_shape,
            grid=grid,
            in_specs=[
                pl.BlockSpec((TM, H), lambda i: (i, 0)),   # x tile (bf16)
                pl.BlockSpec((H, H), lambda i: (0, 0)),    # W, grid-invariant
                pl.BlockSpec((1, H), lambda i: (0, 0)),    # bias (f32)
                pl.BlockSpec((TM, 1), lambda i: (i, 0)),   # attention column
            ],
            out_specs=out_spec,
            compiler_params=compiler_params,
        )(x, W_bf16, b_f32, am)

    rep = rep[:T]
    # rep[text_mask == 1]: data-dependent output shape, so done eagerly in
    # plain JAX outside the kernel (no clean Pallas equivalent).
    # TODO(synk): under jax.jit use jnp.nonzero(..., size=max_tokens) / padded
    # compaction; forward/train_forward/freeze raise NotImplementedError in the
    # PyTorch base class, so only encode() is implemented here.
    return rep[text_mask.reshape(-1) == 1]


if __name__ == "__main__":
    key = jax.random.PRNGKey(0)
    k1, k2, k3, k4 = jax.random.split(key, 4)

    B, L, V, H = 2, 8, 32, 128   # batch, seq-len, vocab, hidden

    # deterministic synthetic parameters (shapes implied by the module)
    emb_table = jax.random.normal(k1, (V, H), dtype=jnp.float32) * 0.02
    W = jax.random.normal(k2, (H, H), dtype=jnp.float32) * 0.02
    b = jnp.zeros((1, H), dtype=jnp.float32)

    # deterministic synthetic batch
    sentence = jax.random.randint(k3, (B, L), 0, V, dtype=jnp.int32)
    attention_mask = jnp.ones((B, L), dtype=jnp.int32).at[:, L - 2:].set(0)
    text_mask = (jnp.ones((B, L), dtype=jnp.int32)
                 .at[:, 0].set(0)
                 .at[:, L - 1].set(0))

    n_sel = int(text_mask.sum())

    # Training path (dropout active).
    out_train = ner_encode(sentence, attention_mask, text_mask, emb_table, W, b,
                           dropout_key=k4, training=True)
    out_train = jax.block_until_ready(out_train)
    assert out_train.shape == (n_sel, H)
    assert bool(jnp.isfinite(out_train.astype(jnp.float32)).all())

    # Eval path (dropout identity) + pure-JAX reference check.
    out_eval = ner_encode(sentence, attention_mask, text_mask, emb_table, W, b,
                          training=False)
    out_eval = jax.block_until_ready(out_eval)
    assert out_eval.shape == (n_sel, H)

    x_ref = emb_table[sentence.reshape(-1)]
    ref = jnp.tanh(x_ref @ W + b) * attention_mask.reshape(-1, 1)
    ref = ref[text_mask.reshape(-1) == 1]
    assert bool(jnp.allclose(out_eval.astype(jnp.float32), ref,
                             atol=3e-2, rtol=3e-2))

    print("KERNEL_OK")
</pallas_src>

<mosaic_0001>
module attributes {stable_mosaic.version = 11 : i64} {
  func.func @encoder_train_kernel(%arg0: i32, %arg1: memref<32x128xbf16, #tpu.memory_space<vmem>>, %arg2: memref<128x128xbf16, #tpu.memory_space<vmem>>, %arg3: memref<1x128xf32, #tpu.memory_space<vmem>>, %arg4: memref<32x128xi8, #tpu.memory_space<vmem>>, %arg5: memref<32x1xf32, #tpu.memory_space<vmem>>, %arg6: memref<32x128xbf16, #tpu.memory_space<vmem>>) attributes {dimension_semantics = [#tpu.dimension_semantics<parallel>], iteration_bounds = array<i64: 1>, scalar_prefetch = 0 : i64, scratch_operands = 0 : i64, tpu.core_type = #tpu.core_type<tc>, window_params = [{transform_indices = @transform_0, window_bounds = array<i64: 32, 128>}, {pipeline_mode = #tpu.pipeline_mode<synchronous>, transform_indices = @transform_1, window_bounds = array<i64: 128, 128>}, {pipeline_mode = #tpu.pipeline_mode<synchronous>, transform_indices = @transform_2, window_bounds = array<i64: 1, 128>}, {transform_indices = @transform_3, window_bounds = array<i64: 32, 128>}, {transform_indices = @transform_4, window_bounds = array<i64: 32, 1>}, {transform_indices = @transform_5, window_bounds = array<i64: 32, 128>}]} {
    %c0 = arith.constant 0 : index
    %c0_0 = arith.constant 0 : index
    %0 = vector.load %arg1[%c0, %c0_0] : memref<32x128xbf16, #tpu.memory_space<vmem>>, vector<32x128xbf16>
    %c0_1 = arith.constant 0 : index
    %c0_2 = arith.constant 0 : index
    %1 = vector.load %arg2[%c0_1, %c0_2] : memref<128x128xbf16, #tpu.memory_space<vmem>>, vector<128x128xbf16>
    %cst = arith.constant dense<0.000000e+00> : vector<32x128xf32>
    %2 = tpu.matmul %0, %1, %cst {dimension_numbers = #tpu.dot_dimension_numbers<[1], [0], [0], [1], [0, 0, 1, 1], [], []>} : vector<32x128xbf16>, vector<128x128xbf16>, vector<32x128xf32> -> vector<32x128xf32>
    %c0_3 = arith.constant 0 : index
    %c0_4 = arith.constant 0 : index
    %3 = vector.load %arg3[%c0_3, %c0_4] : memref<1x128xf32, #tpu.memory_space<vmem>>, vector<1x128xf32>
    %4 = vector.broadcast %3 : vector<1x128xf32> to vector<32x128xf32>
    %5 = arith.addf %2, %4 : vector<32x128xf32>
    %6 = math.tanh %5 : vector<32x128xf32>
    %c0_5 = arith.constant 0 : index
    %c0_6 = arith.constant 0 : index
    %7 = vector.load %arg4[%c0_5, %c0_6] : memref<32x128xi8, #tpu.memory_space<vmem>>, vector<32x128xi8>
    %8 = arith.sitofp %7 : vector<32x128xi8> to vector<32x128xf32>
    %c0_7 = arith.constant 0 : index
    %c0_8 = arith.constant 0 : index
    %9 = vector.load %arg5[%c0_7, %c0_8] : memref<32x1xf32, #tpu.memory_space<vmem>>, vector<32x1xf32>
    %cst_9 = arith.constant 2.000000e+00 : f32
    %10 = vector.broadcast %cst_9 : f32 to vector<32x1xf32>
    %11 = arith.mulf %9, %10 : vector<32x1xf32>
    %12 = vector.broadcast %11 : vector<32x1xf32> to vector<32x128xf32>
    %13 = arith.mulf %8, %12 : vector<32x128xf32>
    %14 = arith.mulf %6, %13 : vector<32x128xf32>
    %15 = arith.truncf %14 : vector<32x128xf32> to vector<32x128xbf16>
    %c0_10 = arith.constant 0 : index
    %c0_11 = arith.constant 0 : index
    %16 = vector.load %arg6[%c0_10, %c0_11] : memref<32x128xbf16, #tpu.memory_space<vmem>>, vector<32x128xbf16>
    tpu.vector_store %arg6[%c0_10, %c0_11], %15 {strides = array<i32>} : memref<32x128xbf16, #tpu.memory_space<vmem>>, vector<32x128xbf16>,
    return
  }
  func.func @transform_0(%arg0: i32) -> (i32, i32) {
    %c0_i32 = arith.constant 0 : i32
    %c0_i32_0 = arith.constant 0 : i32
    return %arg0, %c0_i32 : i32, i32
  }
  func.func @transform_1(%arg0: i32) -> (i32, i32) {
    %c0_i32 = arith.constant 0 : i32
    %c0_i32_0 = arith.constant 0 : i32
    %c0_i32_1 = arith.constant 0 : i32
    return %c0_i32, %c0_i32_0 : i32, i32
  }
  func.func @transform_2(%arg0: i32) -> (i32, i32) {
    %c0_i32 = arith.constant 0 : i32
    %c0_i32_0 = arith.constant 0 : i32
    %c0_i32_1 = arith.constant 0 : i32
    return %c0_i32, %c0_i32_0 : i32, i32
  }
  func.func @transform_3(%arg0: i32) -> (i32, i32) {
    %c0_i32 = arith.constant 0 : i32
    %c0_i32_0 = arith.constant 0 : i32
    return %arg0, %c0_i32 : i32, i32
  }
  func.func @transform_4(%arg0: i32) -> (i32, i32) {
    %c0_i32 = arith.constant 0 : i32
    %c0_i32_0 = arith.constant 0 : i32
    return %arg0, %c0_i32 : i32, i32
  }
  func.func @transform_5(%arg0: i32) -> (i32, i32) {
    %c0_i32 = arith.constant 0 : i32
    %c0_i32_0 = arith.constant 0 : i32
    return %arg0, %c0_i32 : i32, i32
  }
}

</mosaic_0001>

<llo_original>
// kernel: tpu_custom_call.1
$region0: #{tpu_custom_call.1}
  #allocation0 [shape = 'u32[]', space=smem, size = 0x4, offset = 0x4, fixed_abs, tag = 'smem constant byte address 0x4 - core index']
  #allocation1 [shape = 'u32[144,128]{1,0:T(1,128)}', space=vmem, size = 0x12000, scoped, tag = 'internal scratch']
  %s0 = inlined_call_operand.vmem [shape: bf16[32,128], index: 0, kind: input, shape index: {}]
  %s1 = inlined_call_operand.hbm [shape: bf16[128,128], index: 1, kind: input, shape index: {}]
  %s2 = inlined_call_operand.vmem [shape: f32[1,128], index: 2, kind: input, shape index: {}]
  %s3 = inlined_call_operand.vmem [shape: s8[32,128], index: 3, kind: input, shape index: {}]
  %s4 = inlined_call_operand.vmem [shape: f32[32,1], index: 4, kind: input, shape index: {}]
  %s5 = inlined_call_operand.hbm [shape: bf16[32,128], index: 5, kind: output, shape index: {}]
  %s6 = sld [smem:[#allocation0]]
  $region34: #{tpu_custom_call.1} parent=0
    _
  %s8 = ssub.s32 1, %s6
  %s9 = scalar_select 0, %s8, %s6
  $region1: #{tpu_custom_call.1} parent=0
    #allocation2 [shape = 'u8[32768]{0}', space=vmem, size = 0x8000, scoped, tag = 'input window, operand 1, single buffered']
    #allocation3 [shape = 's32[1]{0}', space=sflag, size = 0x4, scoped, tag = 'scoped memory for tpu_custom_call.1']
    #allocation4 [shape = 's32[1]{0}', space=sflag, size = 0x4, scoped, tag = 'scoped memory for tpu_custom_call.1']
    #allocation5 [shape = 'u8[8192]{0}', space=vmem, size = 0x2000, scoped, tag = 'output window, operand 0, single buffered']
    %10 = vsyncpa [#allocation3], 0
    %11 = vsyncpa [#allocation4], 0
    // Predicated region
    $region2: #{tpu_custom_call.1} parent=1 // pred_check
      _
    $region3: #{tpu_custom_call.1} parent=1 // pred_check_branch
      %13 = sbr.rel (0) target = $region5
    $region4: #{tpu_custom_call.1} parent=1 // pred_region
      _
    $region5: #{tpu_custom_call.1} parent=1 // pred_fallthru
      _
    // Predicated region
    $region6: #{tpu_custom_call.1} parent=1 // pred_check
      _
    $region7: #{tpu_custom_call.1} parent=1 // pred_check_branch
      %15 = sbr.rel (0) target = $region9
    $region8: #{tpu_custom_call.1} parent=1 // pred_region
      %s17 = ssub.s32 1024, 1024
      %18 = vsyncadd [#allocation3], %s17
      %s19 = sshll.u32 [#allocation2], 4
      %s20 = int_to_ptr.vmem [resolvable:$true] %s19
      %25 = dma.hbm_to_vmem [thread:$0]  %s1, 1024, %s20, [#allocation3], 64, 64, 4
    $region9: #{tpu_custom_call.1} parent=1 // pred_fallthru
      _
    // Predicated region
    $region10: #{tpu_custom_call.1} parent=1 // pred_check
      _
    $region11: #{tpu_custom_call.1} parent=1 // pred_check_branch
      %27 = sbr.rel (0) target = $region13
    $region12: #{tpu_custom_call.1} parent=1 // pred_region
      _
    $region13: #{tpu_custom_call.1} parent=1 // pred_fallthru
      _
    // Predicated region
    $region14: #{tpu_custom_call.1} parent=1 // pred_check
      _
    $region15: #{tpu_custom_call.1} parent=1 // pred_check_branch
      %29 = sbr.rel (0) target = $region17
    $region16: #{tpu_custom_call.1} parent=1 // pred_region
      _
    $region17: #{tpu_custom_call.1} parent=1 // pred_fallthru
      _
    // Predicated region
    $region18: #{tpu_custom_call.1} parent=1 // pred_check
      _
    $region19: #{tpu_custom_call.1} parent=1 // pred_check_branch
      %31 = sbr.rel (0) target = $region21
    $region20: #{tpu_custom_call.1} parent=1 // pred_region
      _
    $region21: #{tpu_custom_call.1} parent=1 // pred_fallthru
      _
    // Predicated region
    $region22: #{tpu_custom_call.1} parent=1 // pred_check
      _
    $region23: #{tpu_custom_call.1} parent=1 // pred_check_branch
      %33 = sbr.rel (0) target = $region25
    $region24: #{tpu_custom_call.1} parent=1 // pred_region
      %34 = dma.done [#allocation3], 1024
    $region25: #{tpu_custom_call.1} parent=1 // pred_fallthru
      _
    %v36 = vld [vmem:[%s0] sm:$0xf]
    %v37 = vld [vmem:[%s0 + $0x4] sm:$0xf]
    %v38 = vld [vmem:[%s0 + $0x8] sm:$0xf]
    %v39 = vld [vmem:[%s0 + $0xc] sm:$0xf]
    %v40 = vld [vmem:[#allocation2] sm:$0xf]
    %v41 = vld [vmem:[#allocation2 + $0x4] sm:$0xf]
    %v42 = vld [vmem:[#allocation2 + $0x8] sm:$0xf]
    %v43 = vld [vmem:[#allocation2 + $0xc] sm:$0xf]
    %v44 = vld [vmem:[#allocation2 + $0x10] sm:$0xf]
    %v45 = vld [vmem:[#allocation2 + $0x14] sm:$0xf]
    %v46 = vld [vmem:[#allocation2 + $0x18] sm:$0xf]
    %v47 = vld [vmem:[#allocation2 + $0x1c] sm:$0xf]
    %v48 = vld [vmem:[#allocation2 + $0x20] sm:$0xf]
    %v49 = vld [vmem:[#allocation2 + $0x24] sm:$0xf]
    %v50 = vld [vmem:[#allocation2 + $0x28] sm:$0xf]
    %v51 = vld [vmem:[#allocation2 + $0x2c] sm:$0xf]
    %v52 = vld [vmem:[#allocation2 + $0x30] sm:$0xf]
    %v53 = vld [vmem:[#allocation2 + $0x34] sm:$0xf]
    %v54 = vld [vmem:[#allocation2 + $0x38] sm:$0xf]
    %v55 = vld [vmem:[#allocation2 + $0x3c] sm:$0xf]
    %v56 = vld [vmem:[%s2] sm:$0x1]
    %v58 = vlaneseq
    %v59 = vshrl.u32 %v58, 7
    %v60 = vsub.s32 0, %v59
    %v61 = vrot.slane %v56, %v60
    %v67 = vunpack.c.l.b16 %v36
    %v68 = vunpack.c.l.b16 %v37
    %v69 = vunpack.c.l.b16 %v38
    %v70 = vunpack.c.l.b16 %v39
    %v71 = vpack.c.b16 %v68, %v67
    %v72 = vpack.c.b16 %v70, %v69
    %v91 = vunpack.c.l.b16 %v40
    %v92 = vunpack.c.l.b16 %v41
    %v93 = vunpack.c.l.b16 %v42
    %v94 = vunpack.c.l.b16 %v43
    %v95 = vunpack.c.l.b16 %v44
    %v96 = vunpack.c.l.b16 %v45
    %v97 = vunpack.c.l.b16 %v46
    %v98 = vunpack.c.l.b16 %v47
    %v99 = vunpack.c.l.b16 %v48
    %v100 = vunpack.c.l.b16 %v49
    %v101 = vunpack.c.l.b16 %v50
    %v102 = vunpack.c.l.b16 %v51
    %v103 = vunpack.c.l.b16 %v52
    %v104 = vunpack.c.l.b16 %v53
    %v105 = vunpack.c.l.b16 %v54
    %v106 = vunpack.c.l.b16 %v55
    %v107 = vpack.c.b16 %v92, %v91
    %v108 = vpack.c.b16 %v94, %v93
    %v109 = vpack.c.b16 %v96, %v95
    %v110 = vpack.c.b16 %v98, %v97
    %v111 = vpack.c.b16 %v100, %v99
    %v112 = vpack.c.b16 %v102, %v101
    %v113 = vpack.c.b16 %v104, %v103
    %v114 = vpack.c.b16 %v106, %v105
    %123 = vmatprep.subr.bf16.mxu0 0
    %124 = vmatpush1.bf16.msra.mxu0 %v114
    %125 = vmatprep.subr.bf16.mxu0 0
    %126 = vmatpush1.bf16.msra.mxu0 %v113
    %127 = vmatprep.subr.bf16.mxu0 0
    %128 = vmatpush1.bf16.msra.mxu0 %v112
    %129 = vmatprep.subr.bf16.mxu0 0
    %130 = vmatpush1.bf16.msra.mxu0 %v111
    %131 = vmatprep.subr.bf16.mxu0 0
    %132 = vmatpush1.bf16.msra.mxu0 %v110
    %133 = vmatprep.subr.bf16.mxu0 0
    %134 = vmatpush1.bf16.msra.mxu0 %v109
    %135 = vmatprep.subr.bf16.mxu0 0
    %136 = vmatpush1.bf16.msra.mxu0 %v108
    %137 = vmatprep.subr.bf16.mxu0 0
    %138 = vmatpush1.bf16.msra.mxu0 %v107
    %139 = vmatprep.subr.bf16.mxu0 0
    %140 = vmatpush2.bf16.msra.mxu0 0
    %141 = vmatprep.subr.bf16.mxu0 0
    %142 = vmatpush2.bf16.msra.mxu0 0
    %143 = vmatprep.subr.bf16.mxu0 0
    %144 = vmatpush2.bf16.msra.mxu0 0
    %145 = vmatprep.subr.bf16.mxu0 0
    %146 = vmatpush2.bf16.msra.mxu0 0
    %147 = vmatprep.subr.bf16.mxu0 0
    %148 = vmatpush2.bf16.msra.mxu0 0
    %149 = vmatprep.subr.bf16.mxu0 0
    %150 = vmatpush2.bf16.msra.mxu0 0
    %151 = vmatprep.subr.bf16.mxu0 0
    %152 = vmatpush2.bf16.msra.mxu0 0
    %153 = vmatprep.subr.bf16.mxu0 0
    %154 = vmatpush2.bf16.msra.mxu0 0
    %155 = vmatprep.mubr.bf16.mxu0 0
    %156 = vmatmul.mubr.bf16.gmra.mxu0 %v71
    %v157 = vpop.f32.mrf.mxu0
    %v158 = vadd.f32 %v61, %v157
    %v159 = vpop.f32.mrf.mxu0
    %v160 = vpop.f32.mrf.mxu0
    %v161 = vadd.f32 %v61, %v160
    %v162 = vpop.f32.mrf.mxu0
    %163 = vmatprep.mubr.bf16.mxu0 0
    %164 = vmatmul.mubr.bf16.gmra.mxu0 %v72
    %v165 = vpop.f32.mrf.mxu0
    %v166 = vadd.f32 %v61, %v165
    %v167 = vpop.f32.mrf.mxu0
    %v168 = vpop.f32.mrf.mxu0
    %v169 = vadd.f32 %v61, %v168
    %v170 = vpop.f32.mrf.mxu0
    %171 = vdwg.mxu0
    %v172 = vtanh.pop %v158
    %v173 = vtanh.pop %v161
    %v174 = vtanh.pop %v166
    %v175 = vtanh.pop %v169
    %v176 = vld [vmem:[%s3] sm:$0xff]
    %v177 = vunpack.c.0.s8 %v176
    %v178 = vunpack.c.1.s8 %v176
    %v179 = vunpack.c.2.s8 %v176
    %v180 = vunpack.c.3.s8 %v176
    %v181 = vcvt.s32.f32 %v177
    %v182 = vcvt.s32.f32 %v178
    %v183 = vcvt.s32.f32 %v179
    %v184 = vcvt.s32.f32 %v180
    %v185 = vld [vmem:[%s4] sm:$0xff]
    %v186 = vld [vmem:[%s4 + $0x8] sm:$0xff]
    %v187 = vld [vmem:[%s4 + $0x10] sm:$0xff]
    %v188 = vld [vmem:[%s4 + $0x18] sm:$0xff]
    %v189 = vmul.f32 %v185, 2.0
    %v190 = vmul.f32 %v186, 2.0
    %v191 = vmul.f32 %v187, 2.0
    %v192 = vmul.f32 %v188, 2.0
    %194 = vset.pattern.permute.xlu0 0
    %195 = vperm.xlu0 %194, %v189
    %v196 = vpop.permute.xlu0 %195
    %199 = vset.pattern.permute.xlu0 0
    %200 = vperm.xlu0 %199, %v190
    %v201 = vpop.permute.xlu0 %200
    %204 = vset.pattern.permute.xlu0 0
    %205 = vperm.xlu0 %204, %v191
    %v206 = vpop.permute.xlu0 %205
    %209 = vset.pattern.permute.xlu0 0
    %210 = vperm.xlu0 %209, %v192
    %v211 = vpop.permute.xlu0 %210
    %v213 = vmul.f32 %v181, %v196
    %v214 = vmul.f32 %v182, %v201
    %v215 = vmul.f32 %v183, %v206
    %v216 = vmul.f32 %v184, %v211
    %v217 = vmul.f32 %v172, %v213
    %v218 = vmul.f32 %v173, %v214
    %v219 = vmul.f32 %v174, %v215
    %v220 = vmul.f32 %v175, %v216
    %v221 = vpack.c.bf16 %v218, %v217
    %v222 = vpack.c.bf16 %v220, %v219
    %v225 = vunpack.c.l.b16 %v221
    %v226 = vunpack.c.h.b16 %v221
    %v227 = vunpack.c.l.b16 %v222
    %v228 = vunpack.c.h.b16 %v222
    %v229 = vpack.c.b16 %v225, %v225
    %v230 = vpack.c.b16 %v226, %v226
    %v231 = vpack.c.b16 %v227, %v227
    %v232 = vpack.c.b16 %v228, %v228
    %237 = vst [vmem:[#allocation5] sm:$0xf] %v229
    %238 = vst [vmem:[#allocation5 + $0x4] sm:$0xf] %v230
    %239 = vst [vmem:[#allocation5 + $0x8] sm:$0xf] %v231
    %240 = vst [vmem:[#allocation5 + $0xc] sm:$0xf] %v232
    // Predicated region
    $region26: #{tpu_custom_call.1} parent=1 // pred_check
      _
    $region27: #{tpu_custom_call.1} parent=1 // pred_check_branch
      %242 = sbr.rel (0) target = $region29
    $region28: #{tpu_custom_call.1} parent=1 // pred_region
      %s244 = ssub.s32 256, 256
      %245 = vsyncadd [#allocation4], %s244
      %s246 = sshll.u32 [#allocation5], 4
      %s247 = int_to_ptr.vmem [resolvable:$true] %s246
      %252 = dma.vmem_to_hbm [thread:$0]  %s247, 256, %s5, [#allocation4], 64, 64, 4
    $region29: #{tpu_custom_call.1} parent=1 // pred_fallthru
      _
    // Predicated region
    $region30: #{tpu_custom_call.1} parent=1 // pred_check
      _
    $region31: #{tpu_custom_call.1} parent=1 // pred_check_branch
      %254 = sbr.rel (0) target = $region33
    $region32: #{tpu_custom_call.1} parent=1 // pred_region
      %255 = dma.done [#allocation4], 256
    $region33: #{tpu_custom_call.1} parent=1 // pred_fallthru
      _
    %256 = vsyncpa [#allocation3], 1
    %257 = vsyncpa [#allocation4], 1

</llo_original>
